<compile_context>
chip_gen: v7x
topology: tpu7x:2x2x1
jax: 0.10.0
libtpu: 0.0.40
codegen_flags: <defaults>
</compile_context>

<pallas_src>
import functools

import jax
import jax.numpy as jnp
from jax.experimental import pallas as pl
from jax.experimental.pallas import tpu as pltpu


def _focal_loss_kernel(pred_ref, true_ref, out_ref, *, alpha, gamma, eps,
                       n_rows, tile_rows, need_mask):
    """One row-tile: per-row ZLPR focal loss, summed into this tile's partial."""
    i = pl.program_id(0)

    yp = pred_ref[...].astype(jnp.float32)
    yt = true_ref[...].astype(jnp.float32)

    valid = None
    if need_mask:
        # Rows of the boundary tile that fall past R are padding: zero their
        # inputs (so no NaN/Inf garbage propagates) and drop their loss below.
        row = jax.lax.broadcasted_iota(jnp.int32, yp.shape, 0) + i * tile_rows
        valid = row < n_rows
        yp = jnp.where(valid, yp, 0.0)
        yt = jnp.where(valid, yt, 0.0)

    # y_pred = (1 - 2*y_true) * y_pred
    yp = (1.0 - 2.0 * yt) * yp
    y_neg = yp - yt * eps
    y_pos = yp - (1.0 - yt) * eps

    def lse_and_pt(x):
        # logsumexp over the class dim with an implicit extra zero column
        # (== torch.cat([x, zeros], -1).logsumexp(-1)), plus
        # pt = exp(-lse) = exp(-m) / s reusing m and s (no extra exp over rows;
        # the reciprocal goes to the EUP slot via the approx path).
        m = jnp.maximum(jnp.max(x, axis=-1, keepdims=True), 0.0)
        s = jnp.sum(jnp.exp(x - m), axis=-1, keepdims=True) + jnp.exp(-m)
        lse = m + jnp.log(s)
        pt = jnp.exp(-m) * pl.reciprocal(s, approx=True)
        return lse, pt

    neg_loss, neg_pt = lse_and_pt(y_neg)   # (TR, 1) each
    pos_loss, pos_pt = lse_and_pt(y_pos)

    if gamma == 2.0:
        pos_w = jnp.square(1.0 - pos_pt)
        neg_w = jnp.square(1.0 - neg_pt)
    else:
        pos_w = jnp.power(1.0 - pos_pt, gamma)
        neg_w = jnp.power(1.0 - neg_pt, gamma)

    loss = alpha * pos_w * pos_loss + (1.0 - alpha) * neg_w * neg_loss   # (TR, 1)

    if need_mask:
        loss = jnp.where(valid[:, :1], loss, 0.0)

    # One partial sum per tile; the /R and the cross-tile sum happen in JAX.
    out_ref[...] = jnp.sum(loss, keepdims=True)


def _pick_tile_rows(n_rows, n_cols, pred_dtype, true_dtype,
                    max_tile_rows=2048, input_budget_bytes=24 << 20):
    # Double-buffered inputs: 2 inputs x 2 buffers x TR x C x itemsize.
    per_row = 2 * n_cols * (jnp.dtype(pred_dtype).itemsize +
                            jnp.dtype(true_dtype).itemsize)
    tr = max(1, input_budget_bytes // per_row)
    tr = min(tr, max_tile_rows)
    if tr >= n_rows:
        return n_rows                  # single full-extent block (always legal)
    tr = max(32, (tr // 32) * 32)      # sublane-align for f32 / bf16 / int8
    return min(tr, n_rows)


def focal_loss(y_pred, y_true, *, alpha=0.25, gamma=2.0, eps=1e-12,
               tile_rows=None):
    assert y_pred.shape == y_true.shape
    c = y_pred.shape[-1]
    # Keep native dtypes: the f32 upcast happens inside the kernel in VMEM,
    # so HBM traffic is paid at the input width (bf16/int8/bool supported).
    pred2d = y_pred.reshape(-1, c)
    true2d = y_true.reshape(-1, c)
    r = pred2d.shape[0]

    if tile_rows is None:
        tile_rows = _pick_tile_rows(r, c, pred2d.dtype, true2d.dtype)
    tile_rows = min(int(tile_rows), r)
    num_tiles = pl.cdiv(r, tile_rows)
    need_mask = (r % tile_rows) != 0

    kernel = functools.partial(
        _focal_loss_kernel, alpha=float(alpha), gamma=float(gamma),
        eps=float(eps), n_rows=r, tile_rows=tile_rows, need_mask=need_mask)

    partials = pl.pallas_call(
        kernel,
        out_shape=jax.ShapeDtypeStruct((num_tiles, 1), jnp.float32),
        grid_spec=pltpu.PrefetchScalarGridSpec(
            num_scalar_prefetch=0,
            grid=(num_tiles,),
            in_specs=[
                pl.BlockSpec((tile_rows, c), lambda i: (i, 0)),
                pl.BlockSpec((tile_rows, c), lambda i: (i, 0)),
            ],
            out_specs=pl.BlockSpec((1, 1), lambda i: (i, 0)),
        ),
        compiler_params=pltpu.CompilerParams(
            # Each grid step writes its own output block -> safe to shard the
            # axis across both TensorCores on v7x.
            dimension_semantics=("parallel",),
            vmem_limit_bytes=48 * 1024 * 1024),
    )(pred2d, true2d)

    # TODO(synk): for class counts C in the tens of thousands, add a second
    # grid axis over C with an online (streaming) logsumexp instead of
    # requiring the full class dim in one block.
    return jnp.sum(partials) / jnp.float32(r)


def _focal_loss_ref(y_pred, y_true, *, alpha=0.25, gamma=2.0, eps=1e-12):
    y_pred = (1.0 - 2.0 * y_true) * y_pred
    y_pred_neg = y_pred - y_true * eps
    y_pred_pos = y_pred - (1.0 - y_true) * eps
    zeros = jnp.zeros_like(y_pred[..., :1])
    y_pred_neg = jnp.concatenate([y_pred_neg, zeros], axis=-1)
    y_pred_pos = jnp.concatenate([y_pred_pos, zeros], axis=-1)
    neg_loss = jax.scipy.special.logsumexp(y_pred_neg, axis=-1)
    pos_loss = jax.scipy.special.logsumexp(y_pred_pos, axis=-1)
    pos_pt = jnp.exp(-pos_loss)
    neg_pt = jnp.exp(-neg_loss)
    loss = (alpha * (1.0 - pos_pt) ** gamma * pos_loss
            + (1.0 - alpha) * (1.0 - neg_pt) ** gamma * neg_loss)
    return loss.mean()


if __name__ == "__main__":
    key = jax.random.PRNGKey(0)
    k1, k2 = jax.random.split(key)

    # small multilabel setup: batch=2, seq=8, classes=128
    y_pred = jax.random.normal(k1, (2, 8, 128), dtype=jnp.float32) * 2.0
    y_true = (jax.random.uniform(k2, (2, 8, 128)) < 0.1).astype(jnp.float32)

    out = jax.block_until_ready(focal_loss(y_pred, y_true))
    ref = _focal_loss_ref(y_pred, y_true)
    assert jnp.allclose(out, ref, rtol=5e-3, atol=1e-5), (out, ref)

    # Also exercise the cdiv-grid + padded-row-masking path (R % TR != 0).
    k3, k4 = jax.random.split(k1)
    y_pred2 = jax.random.normal(k3, (4, 5, 128), dtype=jnp.float32) * 2.0
    y_true2 = (jax.random.uniform(k4, (4, 5, 128)) < 0.1).astype(jnp.float32)
    out2 = jax.block_until_ready(focal_loss(y_pred2, y_true2, tile_rows=8))
    ref2 = _focal_loss_ref(y_pred2, y_true2)
    assert jnp.allclose(out2, ref2, rtol=5e-3, atol=1e-5), (out2, ref2)

    print("KERNEL_OK")
</pallas_src>

<mosaic_0001>
module attributes {stable_mosaic.version = 11 : i64} {
  func.func @_focal_loss_kernel(%arg0: i32, %arg1: memref<16x128xf32, #tpu.memory_space<vmem>>, %arg2: memref<16x128xf32, #tpu.memory_space<vmem>>, %arg3: memref<1x1xf32, #tpu.memory_space<vmem>>) attributes {dimension_semantics = [#tpu.dimension_semantics<parallel>], iteration_bounds = array<i64: 1>, scalar_prefetch = 0 : i64, scratch_operands = 0 : i64, tpu.core_type = #tpu.core_type<tc>, window_params = [{transform_indices = @transform_0, window_bounds = array<i64: 16, 128>}, {transform_indices = @transform_1, window_bounds = array<i64: 16, 128>}, {transform_indices = @transform_2, window_bounds = array<i64: 1, 1>}]} {
    %c0 = arith.constant 0 : index
    %c0_0 = arith.constant 0 : index
    %0 = vector.load %arg1[%c0, %c0_0] : memref<16x128xf32, #tpu.memory_space<vmem>>, vector<16x128xf32>
    %c0_1 = arith.constant 0 : index
    %c0_2 = arith.constant 0 : index
    %1 = vector.load %arg2[%c0_1, %c0_2] : memref<16x128xf32, #tpu.memory_space<vmem>>, vector<16x128xf32>
    %cst = arith.constant 2.000000e+00 : f32
    %2 = vector.broadcast %cst : f32 to vector<16x128xf32>
    %3 = arith.mulf %2, %1 : vector<16x128xf32>
    %cst_3 = arith.constant 1.000000e+00 : f32
    %4 = vector.broadcast %cst_3 : f32 to vector<16x128xf32>
    %5 = arith.subf %4, %3 : vector<16x128xf32>
    %6 = arith.mulf %5, %0 : vector<16x128xf32>
    %cst_4 = arith.constant 9.99999996E-13 : f32
    %7 = vector.broadcast %cst_4 : f32 to vector<16x128xf32>
    %8 = arith.mulf %1, %7 : vector<16x128xf32>
    %9 = arith.subf %6, %8 : vector<16x128xf32>
    %cst_5 = arith.constant 1.000000e+00 : f32
    %10 = vector.broadcast %cst_5 : f32 to vector<16x128xf32>
    %11 = arith.subf %10, %1 : vector<16x128xf32>
    %cst_6 = arith.constant 9.99999996E-13 : f32
    %12 = vector.broadcast %cst_6 : f32 to vector<16x128xf32>
    %13 = arith.mulf %11, %12 : vector<16x128xf32>
    %14 = arith.subf %6, %13 : vector<16x128xf32>
    %cst_7 = arith.constant dense<0xFF800000> : vector<16xf32>
    %15 = vector.multi_reduction <maximumf>, %9, %cst_7 [1] : vector<16x128xf32> to vector<16xf32>
    %16 = vector.shape_cast %15 : vector<16xf32> to vector<16x1xf32>
    %cst_8 = arith.constant 0.000000e+00 : f32
    %17 = vector.broadcast %cst_8 : f32 to vector<16x1xf32>
    %18 = arith.maximumf %16, %17 : vector<16x1xf32>
    %19 = vector.broadcast %18 : vector<16x1xf32> to vector<16x128xf32>
    %20 = arith.subf %9, %19 : vector<16x128xf32>
    %21 = math.exp %20 : vector<16x128xf32>
    %cst_9 = arith.constant dense<0.000000e+00> : vector<16xf32>
    %22 = vector.multi_reduction <add>, %21, %cst_9 [1] : vector<16x128xf32> to vector<16xf32>
    %23 = vector.shape_cast %22 : vector<16xf32> to vector<16x1xf32>
    %cst_10 = arith.constant 0.000000e+00 : f32
    %24 = vector.broadcast %cst_10 : f32 to vector<16x1xf32>
    %25 = arith.subf %24, %18 : vector<16x1xf32>
    %26 = math.exp %25 : vector<16x1xf32>
    %27 = arith.addf %23, %26 : vector<16x1xf32>
    %28 = math.log %27 : vector<16x1xf32>
    %29 = arith.addf %18, %28 : vector<16x1xf32>
    %cst_11 = arith.constant 0.000000e+00 : f32
    %30 = vector.broadcast %cst_11 : f32 to vector<16x1xf32>
    %31 = arith.subf %30, %18 : vector<16x1xf32>
    %32 = math.exp %31 : vector<16x1xf32>
    %33 = tpu.reciprocal %27 {approx = true} : vector<16x1xf32> -> vector<16x1xf32>
    %34 = arith.mulf %32, %33 : vector<16x1xf32>
    %cst_12 = arith.constant dense<0xFF800000> : vector<16xf32>
    %35 = vector.multi_reduction <maximumf>, %14, %cst_12 [1] : vector<16x128xf32> to vector<16xf32>
    %36 = vector.shape_cast %35 : vector<16xf32> to vector<16x1xf32>
    %cst_13 = arith.constant 0.000000e+00 : f32
    %37 = vector.broadcast %cst_13 : f32 to vector<16x1xf32>
    %38 = arith.maximumf %36, %37 : vector<16x1xf32>
    %39 = vector.broadcast %38 : vector<16x1xf32> to vector<16x128xf32>
    %40 = arith.subf %14, %39 : vector<16x128xf32>
    %41 = math.exp %40 : vector<16x128xf32>
    %cst_14 = arith.constant dense<0.000000e+00> : vector<16xf32>
    %42 = vector.multi_reduction <add>, %41, %cst_14 [1] : vector<16x128xf32> to vector<16xf32>
    %43 = vector.shape_cast %42 : vector<16xf32> to vector<16x1xf32>
    %cst_15 = arith.constant 0.000000e+00 : f32
    %44 = vector.broadcast %cst_15 : f32 to vector<16x1xf32>
    %45 = arith.subf %44, %38 : vector<16x1xf32>
    %46 = math.exp %45 : vector<16x1xf32>
    %47 = arith.addf %43, %46 : vector<16x1xf32>
    %48 = math.log %47 : vector<16x1xf32>
    %49 = arith.addf %38, %48 : vector<16x1xf32>
    %cst_16 = arith.constant 0.000000e+00 : f32
    %50 = vector.broadcast %cst_16 : f32 to vector<16x1xf32>
    %51 = arith.subf %50, %38 : vector<16x1xf32>
    %52 = math.exp %51 : vector<16x1xf32>
    %53 = tpu.reciprocal %47 {approx = true} : vector<16x1xf32> -> vector<16x1xf32>
    %54 = arith.mulf %52, %53 : vector<16x1xf32>
    %cst_17 = arith.constant 1.000000e+00 : f32
    %55 = vector.broadcast %cst_17 : f32 to vector<16x1xf32>
    %56 = arith.subf %55, %54 : vector<16x1xf32>
    %57 = arith.mulf %56, %56 : vector<16x1xf32>
    %cst_18 = arith.constant 1.000000e+00 : f32
    %58 = vector.broadcast %cst_18 : f32 to vector<16x1xf32>
    %59 = arith.subf %58, %34 : vector<16x1xf32>
    %60 = arith.mulf %59, %59 : vector<16x1xf32>
    %cst_19 = arith.constant 2.500000e-01 : f32
    %61 = vector.broadcast %cst_19 : f32 to vector<16x1xf32>
    %62 = arith.mulf %61, %57 : vector<16x1xf32>
    %63 = arith.mulf %62, %49 : vector<16x1xf32>
    %cst_20 = arith.constant 7.500000e-01 : f32
    %64 = vector.broadcast %cst_20 : f32 to vector<16x1xf32>
    %65 = arith.mulf %64, %60 : vector<16x1xf32>
    %66 = arith.mulf %65, %29 : vector<16x1xf32>
    %67 = arith.addf %63, %66 : vector<16x1xf32>
    %68 = vector.shape_cast %67 : vector<16x1xf32> to vector<1x16x1xf32>
    %cst_21 = arith.constant dense<0.000000e+00> : vector<1xf32>
    %69 = vector.multi_reduction <add>, %68, %cst_21 [1, 2] : vector<1x16x1xf32> to vector<1xf32>
    %70 = vector.shape_cast %69 : vector<1xf32> to vector<1x1x1xf32>
    %71 = vector.extract %70[0, 0, 0] : f32 from vector<1x1x1xf32>
    %72 = vector.broadcast %71 : f32 to vector<1x1xf32>
    %c0_22 = arith.constant 0 : index
    %c0_23 = arith.constant 0 : index
    %73 = vector.load %arg3[%c0_22, %c0_23] : memref<1x1xf32, #tpu.memory_space<vmem>>, vector<1x1xf32>
    tpu.vector_store %arg3[%c0_22, %c0_23], %72 {strides = array<i32>} : memref<1x1xf32, #tpu.memory_space<vmem>>, vector<1x1xf32>,
    return
  }
  func.func @transform_0(%arg0: i32) -> (i32, i32) {
    %c0_i32 = arith.constant 0 : i32
    %c0_i32_0 = arith.constant 0 : i32
    return %arg0, %c0_i32 : i32, i32
  }
  func.func @transform_1(%arg0: i32) -> (i32, i32) {
    %c0_i32 = arith.constant 0 : i32
    %c0_i32_0 = arith.constant 0 : i32
    return %arg0, %c0_i32 : i32, i32
  }
  func.func @transform_2(%arg0: i32) -> (i32, i32) {
    %c0_i32 = arith.constant 0 : i32
    %c0_i32_0 = arith.constant 0 : i32
    return %arg0, %c0_i32 : i32, i32
  }
}

</mosaic_0001>

<llo_original>
// kernel: tpu_custom_call.1
$region0: #{tpu_custom_call.1}
  #allocation0 [shape = 'u32[]', space=smem, size = 0x4, offset = 0x4, fixed_abs, tag = 'smem constant byte address 0x4 - core index']
  #allocation1 [shape = 'u32[144,128]{1,0:T(1,128)}', space=vmem, size = 0x12000, scoped, tag = 'internal scratch']
  %s0 = inlined_call_operand.hbm [shape: f32[16,128], index: 0, kind: input, shape index: {}]
  %s1 = inlined_call_operand.hbm [shape: f32[16,128], index: 1, kind: input, shape index: {}]
  %s2 = inlined_call_operand.hbm [shape: f32[1,1], index: 2, kind: output, shape index: {}]
  %s3 = sld [smem:[#allocation0]]
  $region26: #{tpu_custom_call.1} parent=0
    _
  %s5 = ssub.s32 1, %s3
  %s6 = scalar_select 0, %s5, %s3
  $region1: #{tpu_custom_call.1} parent=0
    #allocation2 [shape = 'u8[8192]{0}', space=vmem, size = 0x2000, scoped, tag = 'input window, operand 0, single buffered']
    #allocation3 [shape = 's32[1]{0}', space=sflag, size = 0x4, scoped, tag = 'scoped memory for tpu_custom_call.1']
    #allocation4 [shape = 's32[1]{0}', space=sflag, size = 0x4, scoped, tag = 'scoped memory for tpu_custom_call.1']
    #allocation5 [shape = 'u8[8192]{0}', space=vmem, size = 0x2000, scoped, tag = 'input window, operand 1, single buffered']
    #allocation6 [shape = 's32[1]{0}', space=sflag, size = 0x4, scoped, tag = 'scoped memory for tpu_custom_call.1']
    #allocation7 [shape = 'u8[512]{0}', space=vmem, size = 0x400, scoped, tag = 'output window, operand 0, single buffered']
    %7 = vsyncpa [#allocation3], 0
    %8 = vsyncpa [#allocation6], 0
    %9 = vsyncpa [#allocation4], 0
    // Predicated region
    $region2: #{tpu_custom_call.1} parent=1 // pred_check
      _
    $region3: #{tpu_custom_call.1} parent=1 // pred_check_branch
      %11 = sbr.rel (0) target = $region5
    $region4: #{tpu_custom_call.1} parent=1 // pred_region
      %s13 = ssub.s32 256, 256
      %14 = vsyncadd [#allocation3], %s13
      %s15 = sshll.u32 [#allocation2], 4
      %s16 = int_to_ptr.vmem [resolvable:$true] %s15
      %21 = dma.hbm_to_vmem [thread:$0]  %s0, 256, %s16, [#allocation3], 128, 128, 8
    $region5: #{tpu_custom_call.1} parent=1 // pred_fallthru
      _
    // Predicated region
    $region6: #{tpu_custom_call.1} parent=1 // pred_check
      _
    $region7: #{tpu_custom_call.1} parent=1 // pred_check_branch
      %23 = sbr.rel (0) target = $region9
    $region8: #{tpu_custom_call.1} parent=1 // pred_region
      %s25 = ssub.s32 256, 256
      %26 = vsyncadd [#allocation6], %s25
      %s27 = sshll.u32 [#allocation5], 4
      %s28 = int_to_ptr.vmem [resolvable:$true] %s27
      %33 = dma.hbm_to_vmem [thread:$0]  %s1, 256, %s28, [#allocation6], 128, 128, 8
    $region9: #{tpu_custom_call.1} parent=1 // pred_fallthru
      _
    // Predicated region
    $region10: #{tpu_custom_call.1} parent=1 // pred_check
      _
    $region11: #{tpu_custom_call.1} parent=1 // pred_check_branch
      %35 = sbr.rel (0) target = $region13
    $region12: #{tpu_custom_call.1} parent=1 // pred_region
      %36 = dma.done [#allocation3], 256
    $region13: #{tpu_custom_call.1} parent=1 // pred_fallthru
      _
    // Predicated region
    $region14: #{tpu_custom_call.1} parent=1 // pred_check
      _
    $region15: #{tpu_custom_call.1} parent=1 // pred_check_branch
      %38 = sbr.rel (0) target = $region17
    $region16: #{tpu_custom_call.1} parent=1 // pred_region
      %39 = dma.done [#allocation6], 256
    $region17: #{tpu_custom_call.1} parent=1 // pred_fallthru
      _
    %v40 = vld [vmem:[#allocation2] sm:$0xff]
    %v41 = vld [vmem:[#allocation2 + $0x8] sm:$0xff]
    %v42 = vld [vmem:[#allocation5] sm:$0xff]
    %v43 = vld [vmem:[#allocation5 + $0x8] sm:$0xff]
    %v44 = vmul.f32 %v42, 2.0
    %v45 = vmul.f32 %v43, 2.0
    %v46 = vsub.f32 1.0, %v44
    %v47 = vsub.f32 1.0, %v45
    %v48 = vmul.f32 %v46, %v40
    %v49 = vmul.f32 %v47, %v41
    %v50 = vmul.f32 %v42, 1e-12
    %v51 = vmul.f32 %v43, 1e-12
    %v52 = vsub.f32 %v48, %v50
    %v53 = vsub.f32 %v49, %v51
    %v54 = vsub.f32 1.0, %v42
    %v55 = vsub.f32 1.0, %v43
    %v56 = vmul.f32 %v54, 1e-12
    %v57 = vmul.f32 %v55, 1e-12
    %v58 = vsub.f32 %v48, %v56
    %v59 = vsub.f32 %v49, %v57
    %60 = vmax.xlane.f32.xlu0 %v52
    %v61 = vpop.xlane.xlu0 %60
    %62 = vmax.xlane.f32.xlu0 %v53
    %v63 = vpop.xlane.xlu0 %62
    %v64 = vmax.f32 %v61, 0.0
    %v65 = vmax.f32 %v63, 0.0
    %v66 = vsub.f32 %v52, %v64
    %v67 = vsub.f32 %v53, %v65
    %v68 = vmul.f32 %v66, 1.442695
    %v69 = vpow.pop %v68
    %v70 = vmul.f32 %v67, 1.442695
    %v71 = vpow.pop %v70
    %72 = vadd.xlane.f32.xlu0 %v69
    %v73 = vpop.xlane.xlu0 %72
    %74 = vadd.xlane.f32.xlu0 %v71
    %v75 = vpop.xlane.xlu0 %74
    %v76 = vsub.f32 0.0, %v64
    %v77 = vsub.f32 0.0, %v65
    %v78 = vmul.f32 %v76, 1.442695
    %v79 = vpow.pop %v78
    %v80 = vmul.f32 %v77, 1.442695
    %v81 = vpow.pop %v80
    %v82 = vadd.f32 %v73, %v79
    %v83 = vadd.f32 %v75, %v81
    %v84 = vlog2.pop %v82
    %v85 = vmul.f32 %v84, 0.6931472
    %v86 = vlog2.pop %v83
    %v87 = vmul.f32 %v86, 0.6931472
    %v88 = vadd.f32 %v64, %v85
    %v89 = vadd.f32 %v65, %v87
    %v90 = vrcp.pop %v82
    %v91 = vrcp.pop %v83
    %v92 = vmul.f32 %v79, %v90
    %v93 = vmul.f32 %v81, %v91
    %94 = vmax.xlane.f32.xlu0 %v58
    %v95 = vpop.xlane.xlu0 %94
    %96 = vmax.xlane.f32.xlu0 %v59
    %v97 = vpop.xlane.xlu0 %96
    %v98 = vmax.f32 %v95, 0.0
    %v99 = vmax.f32 %v97, 0.0
    %v100 = vsub.f32 %v58, %v98
    %v101 = vsub.f32 %v59, %v99
    %v102 = vmul.f32 %v100, 1.442695
    %v103 = vpow.pop %v102
    %v104 = vmul.f32 %v101, 1.442695
    %v105 = vpow.pop %v104
    %106 = vadd.xlane.f32.xlu0 %v103
    %v107 = vpop.xlane.xlu0 %106
    %108 = vadd.xlane.f32.xlu0 %v105
    %v109 = vpop.xlane.xlu0 %108
    %v110 = vsub.f32 0.0, %v98
    %v111 = vsub.f32 0.0, %v99
    %v112 = vmul.f32 %v110, 1.442695
    %v113 = vpow.pop %v112
    %v114 = vmul.f32 %v111, 1.442695
    %v115 = vpow.pop %v114
    %v116 = vadd.f32 %v107, %v113
    %v117 = vadd.f32 %v109, %v115
    %v118 = vlog2.pop %v116
    %v119 = vmul.f32 %v118, 0.6931472
    %v120 = vlog2.pop %v117
    %v121 = vmul.f32 %v120, 0.6931472
    %v122 = vadd.f32 %v98, %v119
    %v123 = vadd.f32 %v99, %v121
    %v124 = vrcp.pop %v116
    %v125 = vrcp.pop %v117
    %v126 = vmul.f32 %v113, %v124
    %v127 = vmul.f32 %v115, %v125
    %v128 = vsub.f32 1.0, %v126
    %v129 = vsub.f32 1.0, %v127
    %v130 = vmul.f32 %v128, %v128
    %v131 = vmul.f32 %v129, %v129
    %v132 = vsub.f32 1.0, %v92
    %v133 = vsub.f32 1.0, %v93
    %v134 = vmul.f32 %v132, %v132
    %v135 = vmul.f32 %v133, %v133
    %v136 = vmul.f32 %v130, 0.25
    %v137 = vmul.f32 %v131, 0.25
    %v138 = vmul.f32 %v136, %v122
    %v139 = vmul.f32 %v137, %v123
    %v140 = vmul.f32 %v134, 0.75
    %v141 = vmul.f32 %v135, 0.75
    %v142 = vmul.f32 %v140, %v88
    %v143 = vmul.f32 %v141, %v89
    %v144 = vadd.f32 %v138, %v142
    %v145 = vadd.f32 %v139, %v143
    %vm146 = vcmask 7168
    %v147 = vsel %vm146, %v144, 0.0
    %v148 = vsel %vm146, %v145, 0.0
    %v149 = vadd.f32 %v147, %v148
    %150 = vadd.xlane.f32.xlu0 %v149
    %v151 = vpop.xlane.xlu0 %150
    %v152 = vrot.slane %v151, 4
    %v153 = vadd.f32 %v151, %v152
    %v154 = vrot.slane %v153, 2
    %v155 = vadd.f32 %v153, %v154
    %v156 = vrot.slane %v155, 1
    %v157 = vadd.f32 %v155, %v156
    %s158 = vtos %v157
    %v159 = vstv %s158
    %vm160 = vcmask 0
    %161 = vst.msk [vmem:[#allocation7] sm:$0x1] %vm160, %v159
    // Predicated region
    $region18: #{tpu_custom_call.1} parent=1 // pred_check
      _
    $region19: #{tpu_custom_call.1} parent=1 // pred_check_branch
      %163 = sbr.rel (0) target = $region21
    $region20: #{tpu_custom_call.1} parent=1 // pred_region
      %s165 = ssub.s32 16, 16
      %166 = vsyncadd [#allocation4], %s165
      %s168 = sshll.u32 [#allocation7], 4
      %s169 = int_to_ptr.vmem [resolvable:$true] %s168
      %171 = dma.vmem_to_hbm [thread:$0]  %s169, 16, %s2, [#allocation4]
    $region21: #{tpu_custom_call.1} parent=1 // pred_fallthru
      _
    // Predicated region
    $region22: #{tpu_custom_call.1} parent=1 // pred_check
      _
    $region23: #{tpu_custom_call.1} parent=1 // pred_check_branch
      %173 = sbr.rel (0) target = $region25
    $region24: #{tpu_custom_call.1} parent=1 // pred_region
      %174 = dma.done [#allocation4], 16
    $region25: #{tpu_custom_call.1} parent=1 // pred_fallthru
      _
    %175 = vsyncpa [#allocation3], 1
    %176 = vsyncpa [#allocation6], 1
    %177 = vsyncpa [#allocation4], 1

</llo_original>
